<compile_context>
chip_gen: v5e
topology: v5e:2x2
jax: 0.10.0
libtpu: 0.0.40
codegen_flags: <defaults>
</compile_context>

<pallas_src>
import functools

import jax
import jax.numpy as jnp
from jax.experimental import pallas as pl
from jax.experimental.pallas import tpu as pltpu


def _round_up(n: int, m: int) -> int:
    return ((n + m - 1) // m) * m


# v6e/v7x MXU is 2x256x256: padding contraction dims to 256 fills the systolic
# array.  (On v5e's 128x128 MXU, 128 would suffice; the extra zero columns are
# resident-weight-only and numerically exact.)
_CONTRACTION_GRAIN = 256
_LANE_GRAIN = 128


def _vmem_capacity_bytes() -> int:
    try:
        return int(pltpu.get_tpu_info().vmem_capacity_bytes)
    except Exception:
        return 64 << 20          # conservative default (v7x per-TC VMEM)


def _spec(block_shape, index_map, buffers=None):
    """BlockSpec with an explicit buffer depth; falls back to the default
    double-buffered spec if this jax build lacks pipeline_mode."""
    if buffers is not None:
        try:
            return pl.BlockSpec(block_shape, index_map,
                                pipeline_mode=pl.Buffered(buffers))
        except (TypeError, AttributeError):
            pass
    return pl.BlockSpec(block_shape, index_map)


def mlp_kernel(x_ref, w1_ref, w2_ref, b2_ref, o_ref):
    # Two bf16 MXU matmuls with f32 accumulation; ReLU + bias on the VPU.
    x = x_ref[...].astype(jnp.bfloat16)                      # cast is VPU filler
    h = jnp.dot(x, w1_ref[...], preferred_element_type=jnp.float32)
    h = jnp.maximum(h, 0.0).astype(jnp.bfloat16)              # ReLU, feed MXU bf16
    y = jnp.dot(h, w2_ref[...], preferred_element_type=jnp.float32)
    y = y + b2_ref[...]                                       # (1, d_out_p) broadcast
    o_ref[...] = y.astype(o_ref.dtype)


def prepare_params(w1, w2, b2):
    """One-time weight prep (hoisted out of the per-call path): zero-pad the
    contraction/lane dims and cast the MXU operands to bf16.  Zero padding is
    numerically exact (zero rows/cols contribute nothing; ReLU(0) = 0)."""
    d_in, d_hid = w1.shape
    d_out = w2.shape[1]
    d_in_p = _round_up(d_in, _CONTRACTION_GRAIN)
    d_hid_p = _round_up(d_hid, _CONTRACTION_GRAIN)
    d_out_p = _round_up(d_out, _LANE_GRAIN)
    w1p = jnp.zeros((d_in_p, d_hid_p), jnp.bfloat16).at[:d_in, :d_hid].set(
        w1.astype(jnp.bfloat16))
    w2p = jnp.zeros((d_hid_p, d_out_p), jnp.bfloat16).at[:d_hid, :d_out].set(
        w2.astype(jnp.bfloat16))
    b2p = jnp.zeros((1, d_out_p), jnp.float32).at[0, :d_out].set(
        b2.astype(jnp.float32))
    return w1p, w2p, b2p


def two_layer_net(x, w1p, w2p, b2p, *, d_out):
    """x: (B, d_in); w1p/w2p/b2p: outputs of prepare_params; d_out: true output dim.

    Weights are stored pre-transposed ((d_in, d_out)-style), so the kernel
    does plain x @ W — same math as PyTorch's x @ W.T with (d_out, d_in)
    storage.
    """
    B, d_in = x.shape
    d_in_p, d_hid_p = w1p.shape
    d_out_p = w2p.shape[1]
    out_dtype = x.dtype

    # ----- generation-aware VMEM budget and batch-tile selection ------------
    vmem_cap = _vmem_capacity_bytes()
    vmem_limit = max(32 << 20, min(int(0.85 * vmem_cap), 112 << 20))
    w_bytes = (w1p.size + w2p.size) * 2 + b2p.size * 4        # single-buffered
    tile_budget = vmem_limit - w_bytes

    # Deeper x pipelining when arithmetic intensity per x byte is low
    # (small d_hid => streaming-bound, not MXU-bound).
    x_buffers = 3 if d_hid_p <= 256 else 2
    x_itemsize = jnp.dtype(x.dtype).itemsize
    out_itemsize = jnp.dtype(out_dtype).itemsize

    def tile_bytes(tb):
        return (x_buffers * tb * d_in_p * x_itemsize          # streamed x tiles
                + 2 * tb * d_out_p * out_itemsize              # streamed out tiles
                + tb * d_hid_p * (4 + 2)                       # f32 h + bf16 copy
                + tb * d_out_p * 4)                            # f32 y accumulator

    candidates = (1024, 512, 256, 128, 64, 32, 16)
    feasible = [tb for tb in candidates if tile_bytes(tb) <= tile_budget] or [16]
    b16 = _round_up(max(B, 1), 16)        # bf16 packs 16 rows per sublane tile
    opts = [tb for tb in feasible if tb <= b16] or [min(feasible)]
    # Minimize batch-padding waste; break ties toward the larger tile.
    TB = min(opts, key=lambda tb: (_round_up(B, tb) - B, -tb))
    B_p = _round_up(B, TB)
    grid_steps = B_p // TB
    x_buf_eff = max(2, min(x_buffers, grid_steps))

    # ----- x: avoid wrapper round trips when already aligned ---------------
    if B_p == B and d_in_p == d_in:
        xp = x                             # stream original array; cast in-kernel
    else:
        # Pad and fold the bf16 cast into the same op (half the pad traffic).
        xp = jnp.zeros((B_p, d_in_p), jnp.bfloat16).at[:B, :d_in].set(
            x.astype(jnp.bfloat16))

    flops = 2 * B_p * d_in_p * d_hid_p + 2 * B_p * d_hid_p * d_out_p
    bytes_accessed = (xp.size * jnp.dtype(xp.dtype).itemsize + w_bytes
                      + B_p * d_out_p * out_itemsize)

    out = pl.pallas_call(
        mlp_kernel,
        out_shape=jax.ShapeDtypeStruct((B_p, d_out_p), out_dtype),
        grid=(grid_steps,),
        in_specs=[
            _spec((TB, d_in_p), lambda i: (i, 0), buffers=x_buf_eff),   # streamed x
            _spec((d_in_p, d_hid_p), lambda i: (0, 0), buffers=1),      # resident w1
            _spec((d_hid_p, d_out_p), lambda i: (0, 0), buffers=1),     # resident w2
            _spec((1, d_out_p), lambda i: (0, 0), buffers=1),           # resident b2
        ],
        out_specs=pl.BlockSpec((TB, d_out_p), lambda i: (i, 0)),
        compiler_params=pltpu.CompilerParams(
            dimension_semantics=("parallel",),   # megacore / dual-TC sharding
            vmem_limit_bytes=vmem_limit,
        ),
        cost_estimate=pl.CostEstimate(
            flops=flops, transcendentals=0, bytes_accessed=bytes_accessed),
        # TODO(synk): for very large d_hid (>= ~2048 at TB=512), add a d_hid
        # reduction grid axis (last, "arbitrary") with an f32 VMEM accumulator
        # initialized under pl.when(k == 0) instead of holding the whole f32 h.
    )(xp, w1p, w2p, b2p)

    if B_p == B and d_out_p == d_out:
        return out
    return out[:B, :d_out]


if __name__ == "__main__":
    # Small, module-consistent shapes.
    B, d_input, d_hidden, d_output = 8, 32, 64, 16

    key = jax.random.PRNGKey(0)
    kx, kw1, kw2, kb2 = jax.random.split(key, 4)

    x = jax.random.normal(kx, (B, d_input), dtype=jnp.float32)
    # Stored transposed as (d_in, d_out) for direct x @ W in the kernel.
    w1 = jax.random.normal(kw1, (d_input, d_hidden), dtype=jnp.float32) * 0.1
    w2 = jax.random.normal(kw2, (d_hidden, d_output), dtype=jnp.float32) * 0.1
    b2 = jax.random.normal(kb2, (d_output,), dtype=jnp.float32) * 0.1

    # One-time weight prep (pad + bf16 cast) hoisted out of the hot path.
    w1p, w2p, b2p = prepare_params(w1, w2, b2)

    fwd = jax.jit(functools.partial(two_layer_net, d_out=d_output))
    y = fwd(x, w1p, w2p, b2p)
    jax.block_until_ready(y)

    # Reference (same math as the PyTorch module, in f32).  The kernel runs the
    # matmuls in bf16 with f32 accumulation, so compare with bf16 tolerances.
    y_ref = jnp.maximum(x @ w1, 0.0) @ w2 + b2
    assert y.shape == (B, d_output), y.shape
    assert jnp.allclose(y, y_ref, atol=2e-2, rtol=2e-2), (
        float(jnp.max(jnp.abs(y - y_ref))))

    print("KERNEL_OK")
</pallas_src>

<mosaic_0001>
module attributes {stable_mosaic.version = 11 : i64} {
  func.func @mlp_kernel(%arg0: i32, %arg1: memref<16x256xbf16, #tpu.memory_space<vmem>>, %arg2: memref<256x256xbf16, #tpu.memory_space<vmem>>, %arg3: memref<256x128xbf16, #tpu.memory_space<vmem>>, %arg4: memref<1x128xf32, #tpu.memory_space<vmem>>, %arg5: memref<16x128xf32, #tpu.memory_space<vmem>>) attributes {dimension_semantics = [#tpu.dimension_semantics<parallel>], iteration_bounds = array<i64: 1>, scalar_prefetch = 0 : i64, scratch_operands = 0 : i64, tpu.core_type = #tpu.core_type<tc>, window_params = [{pipeline_mode = #tpu.pipeline_mode<double_buffered>, transform_indices = @transform_0, window_bounds = array<i64: 16, 256>}, {pipeline_mode = #tpu.pipeline_mode<synchronous>, transform_indices = @transform_1, window_bounds = array<i64: 256, 256>}, {pipeline_mode = #tpu.pipeline_mode<synchronous>, transform_indices = @transform_2, window_bounds = array<i64: 256, 128>}, {pipeline_mode = #tpu.pipeline_mode<synchronous>, transform_indices = @transform_3, window_bounds = array<i64: 1, 128>}, {transform_indices = @transform_4, window_bounds = array<i64: 16, 128>}]} {
    %c0 = arith.constant 0 : index
    %c0_0 = arith.constant 0 : index
    %0 = vector.load %arg1[%c0, %c0_0] : memref<16x256xbf16, #tpu.memory_space<vmem>>, vector<16x256xbf16>
    %c0_1 = arith.constant 0 : index
    %c0_2 = arith.constant 0 : index
    %1 = vector.load %arg2[%c0_1, %c0_2] : memref<256x256xbf16, #tpu.memory_space<vmem>>, vector<256x256xbf16>
    %cst = arith.constant dense<0.000000e+00> : vector<16x256xf32>
    %2 = tpu.matmul %0, %1, %cst {dimension_numbers = #tpu.dot_dimension_numbers<[1], [0], [0], [1], [0, 0, 1, 1], [], []>} : vector<16x256xbf16>, vector<256x256xbf16>, vector<16x256xf32> -> vector<16x256xf32>
    %cst_3 = arith.constant 0.000000e+00 : f32
    %3 = vector.broadcast %cst_3 : f32 to vector<16x256xf32>
    %4 = arith.maximumf %2, %3 : vector<16x256xf32>
    %5 = arith.truncf %4 : vector<16x256xf32> to vector<16x256xbf16>
    %c0_4 = arith.constant 0 : index
    %c0_5 = arith.constant 0 : index
    %6 = vector.load %arg3[%c0_4, %c0_5] : memref<256x128xbf16, #tpu.memory_space<vmem>>, vector<256x128xbf16>
    %cst_6 = arith.constant dense<0.000000e+00> : vector<16x128xf32>
    %7 = tpu.matmul %5, %6, %cst_6 {dimension_numbers = #tpu.dot_dimension_numbers<[1], [0], [0], [1], [0, 0, 1, 1], [], []>} : vector<16x256xbf16>, vector<256x128xbf16>, vector<16x128xf32> -> vector<16x128xf32>
    %c0_7 = arith.constant 0 : index
    %c0_8 = arith.constant 0 : index
    %8 = vector.load %arg4[%c0_7, %c0_8] : memref<1x128xf32, #tpu.memory_space<vmem>>, vector<1x128xf32>
    %9 = vector.broadcast %8 : vector<1x128xf32> to vector<16x128xf32>
    %10 = arith.addf %7, %9 : vector<16x128xf32>
    %c0_9 = arith.constant 0 : index
    %c0_10 = arith.constant 0 : index
    %11 = vector.load %arg5[%c0_9, %c0_10] : memref<16x128xf32, #tpu.memory_space<vmem>>, vector<16x128xf32>
    tpu.vector_store %arg5[%c0_9, %c0_10], %10 {strides = array<i32>} : memref<16x128xf32, #tpu.memory_space<vmem>>, vector<16x128xf32>,
    return
  }
  func.func @transform_0(%arg0: i32) -> (i32, i32) {
    %c0_i32 = arith.constant 0 : i32
    %c0_i32_0 = arith.constant 0 : i32
    return %arg0, %c0_i32 : i32, i32
  }
  func.func @transform_1(%arg0: i32) -> (i32, i32) {
    %c0_i32 = arith.constant 0 : i32
    %c0_i32_0 = arith.constant 0 : i32
    %c0_i32_1 = arith.constant 0 : i32
    return %c0_i32, %c0_i32_0 : i32, i32
  }
  func.func @transform_2(%arg0: i32) -> (i32, i32) {
    %c0_i32 = arith.constant 0 : i32
    %c0_i32_0 = arith.constant 0 : i32
    %c0_i32_1 = arith.constant 0 : i32
    return %c0_i32, %c0_i32_0 : i32, i32
  }
  func.func @transform_3(%arg0: i32) -> (i32, i32) {
    %c0_i32 = arith.constant 0 : i32
    %c0_i32_0 = arith.constant 0 : i32
    %c0_i32_1 = arith.constant 0 : i32
    return %c0_i32, %c0_i32_0 : i32, i32
  }
  func.func @transform_4(%arg0: i32) -> (i32, i32) {
    %c0_i32 = arith.constant 0 : i32
    %c0_i32_0 = arith.constant 0 : i32
    return %arg0, %c0_i32 : i32, i32
  }
}

</mosaic_0001>

<llo_original>
// kernel: two_layer_net.1
$region0: #{two_layer_net.1}
  #allocation0 [shape = 'u32[]', space=smem, size = 0x4, offset = 0x4, fixed_abs, tag = 'smem constant byte address 0x4 - core index']
  #allocation1 [shape = 'u32[72,128]{1,0:T(1,128)}', space=vmem, size = 0x9000, scoped, tag = 'internal scratch']
  %s0 = inlined_call_operand.vmem [shape: bf16[16,256], index: 0, kind: input, shape index: {}]
  %s1 = inlined_call_operand.hbm [shape: bf16[256,256], index: 1, kind: input, shape index: {}]
  %s2 = inlined_call_operand.hbm [shape: bf16[256,128], index: 2, kind: input, shape index: {}]
  %s3 = inlined_call_operand.vmem [shape: f32[1,128], index: 3, kind: input, shape index: {}]
  %s4 = inlined_call_operand.vmem [shape: f32[16,128], index: 4, kind: output, shape index: {}]
  %s5 = sld [smem:[#allocation0]]
  $region34: #{two_layer_net.1} parent=0
    _
  %s7 = ssub.s32 1, %s5
  %s8 = scalar_select 0, %s7, %s5
  $region1: #{two_layer_net.1} parent=0
    #allocation2 [shape = 'u8[131072]{0}', space=vmem, size = 0x20000, scoped, tag = 'input window, operand 1, single buffered']
    #allocation3 [shape = 's32[1]{0}', space=sflag, size = 0x4, scoped, tag = 'scoped memory for two_layer_net.1']
    #allocation4 [shape = 'u8[65536]{0}', space=vmem, size = 0x10000, scoped, tag = 'input window, operand 2, single buffered']
    #allocation5 [shape = 's32[1]{0}', space=sflag, size = 0x4, scoped, tag = 'scoped memory for two_layer_net.1']
    %9 = vsyncpa [#allocation3], 0
    %10 = vsyncpa [#allocation5], 0
    // Predicated region
    $region2: #{two_layer_net.1} parent=1 // pred_check
      _
    $region3: #{two_layer_net.1} parent=1 // pred_check_branch
      %12 = sbr.rel (0) target = $region5
    $region4: #{two_layer_net.1} parent=1 // pred_region
      _
    $region5: #{two_layer_net.1} parent=1 // pred_fallthru
      _
    // Predicated region
    $region6: #{two_layer_net.1} parent=1 // pred_check
      _
    $region7: #{two_layer_net.1} parent=1 // pred_check_branch
      %14 = sbr.rel (0) target = $region9
    $region8: #{two_layer_net.1} parent=1 // pred_region
      %16 = vsyncadd [#allocation3], 0
      %s17 = sshll.u32 %s1, 4
      %s18 = int_to_ptr.hbm [resolvable:$true] %s17
      %s19 = sshll.u32 [#allocation2], 4
      %s20 = int_to_ptr.vmem [resolvable:$true] %s19
      %25 = dma.hbm_to_vmem [thread:$0]  %s18, 4096, %s20, [#allocation3], 128, 128, 8
    $region9: #{two_layer_net.1} parent=1 // pred_fallthru
      _
    // Predicated region
    $region10: #{two_layer_net.1} parent=1 // pred_check
      _
    $region11: #{two_layer_net.1} parent=1 // pred_check_branch
      %27 = sbr.rel (0) target = $region13
    $region12: #{two_layer_net.1} parent=1 // pred_region
      %29 = vsyncadd [#allocation5], 0
      %s30 = sshll.u32 %s2, 4
      %s31 = int_to_ptr.hbm [resolvable:$true] %s30
      %s32 = sshll.u32 [#allocation4], 4
      %s33 = int_to_ptr.vmem [resolvable:$true] %s32
      %38 = dma.hbm_to_vmem [thread:$0]  %s31, 2048, %s33, [#allocation5], 64, 64, 4
    $region13: #{two_layer_net.1} parent=1 // pred_fallthru
      _
    // Predicated region
    $region14: #{two_layer_net.1} parent=1 // pred_check
      _
    $region15: #{two_layer_net.1} parent=1 // pred_check_branch
      %40 = sbr.rel (0) target = $region17
    $region16: #{two_layer_net.1} parent=1 // pred_region
      _
    $region17: #{two_layer_net.1} parent=1 // pred_fallthru
      _
    // Predicated region
    $region18: #{two_layer_net.1} parent=1 // pred_check
      _
    $region19: #{two_layer_net.1} parent=1 // pred_check_branch
      %42 = sbr.rel (0) target = $region21
    $region20: #{two_layer_net.1} parent=1 // pred_region
      %44 = dma.done [#allocation3], 4096
    $region21: #{two_layer_net.1} parent=1 // pred_fallthru
      _
    // Predicated region
    $region22: #{two_layer_net.1} parent=1 // pred_check
      _
    $region23: #{two_layer_net.1} parent=1 // pred_check_branch
      %46 = sbr.rel (0) target = $region25
    $region24: #{two_layer_net.1} parent=1 // pred_region
      %48 = dma.done [#allocation5], 2048
    $region25: #{two_layer_net.1} parent=1 // pred_fallthru
      _
    %v49 = vld [vmem:[%s0] sm:$0xff]
    %v50 = vld [vmem:[%s0 + $0x8] sm:$0xff]
    %v51 = vld [vmem:[#allocation2] sm:$0xff]
    %v52 = vld [vmem:[#allocation2 + $0x8] sm:$0xff]
    %v53 = vld [vmem:[#allocation2 + $0x10] sm:$0xff]
    %v54 = vld [vmem:[#allocation2 + $0x18] sm:$0xff]
    %v55 = vld [vmem:[#allocation2 + $0x20] sm:$0xff]
    %v56 = vld [vmem:[#allocation2 + $0x28] sm:$0xff]
    %v57 = vld [vmem:[#allocation2 + $0x30] sm:$0xff]
    %v58 = vld [vmem:[#allocation2 + $0x38] sm:$0xff]
    %v59 = vld [vmem:[#allocation2 + $0x40] sm:$0xff]
    %v60 = vld [vmem:[#allocation2 + $0x48] sm:$0xff]
    %v61 = vld [vmem:[#allocation2 + $0x50] sm:$0xff]
    %v62 = vld [vmem:[#allocation2 + $0x58] sm:$0xff]
    %v63 = vld [vmem:[#allocation2 + $0x60] sm:$0xff]
    %v64 = vld [vmem:[#allocation2 + $0x68] sm:$0xff]
    %v65 = vld [vmem:[#allocation2 + $0x70] sm:$0xff]
    %v66 = vld [vmem:[#allocation2 + $0x78] sm:$0xff]
    %v67 = vld [vmem:[#allocation2 + $0x80] sm:$0xff]
    %v68 = vld [vmem:[#allocation2 + $0x88] sm:$0xff]
    %v69 = vld [vmem:[#allocation2 + $0x90] sm:$0xff]
    %v70 = vld [vmem:[#allocation2 + $0x98] sm:$0xff]
    %v71 = vld [vmem:[#allocation2 + $0xa0] sm:$0xff]
    %v72 = vld [vmem:[#allocation2 + $0xa8] sm:$0xff]
    %v73 = vld [vmem:[#allocation2 + $0xb0] sm:$0xff]
    %v74 = vld [vmem:[#allocation2 + $0xb8] sm:$0xff]
    %v75 = vld [vmem:[#allocation2 + $0xc0] sm:$0xff]
    %v76 = vld [vmem:[#allocation2 + $0xc8] sm:$0xff]
    %v77 = vld [vmem:[#allocation2 + $0xd0] sm:$0xff]
    %v78 = vld [vmem:[#allocation2 + $0xd8] sm:$0xff]
    %v79 = vld [vmem:[#allocation2 + $0xe0] sm:$0xff]
    %v80 = vld [vmem:[#allocation2 + $0xe8] sm:$0xff]
    %v81 = vld [vmem:[#allocation2 + $0xf0] sm:$0xff]
    %v82 = vld [vmem:[#allocation2 + $0xf8] sm:$0xff]
    %v85 = vunpack.c.l.b16 %v49
    %v86 = vunpack.c.h.b16 %v49
    %v87 = vunpack.c.l.b16 %v50
    %v88 = vunpack.c.h.b16 %v50
    %v89 = vpack.c.b16 %v87, %v85
    %v90 = vpack.c.b16 %v88, %v86
    %v125 = vunpack.c.l.b16 %v51
    %v126 = vunpack.c.h.b16 %v51
    %v127 = vunpack.c.l.b16 %v52
    %v128 = vunpack.c.h.b16 %v52
    %v129 = vunpack.c.l.b16 %v53
    %v130 = vunpack.c.h.b16 %v53
    %v131 = vunpack.c.l.b16 %v54
    %v132 = vunpack.c.h.b16 %v54
    %v133 = vunpack.c.l.b16 %v55
    %v134 = vunpack.c.h.b16 %v55
    %v135 = vunpack.c.l.b16 %v56
    %v136 = vunpack.c.h.b16 %v56
    %v137 = vunpack.c.l.b16 %v57
    %v138 = vunpack.c.h.b16 %v57
    %v139 = vunpack.c.l.b16 %v58
    %v140 = vunpack.c.h.b16 %v58
    %v141 = vunpack.c.l.b16 %v59
    %v142 = vunpack.c.h.b16 %v59
    %v143 = vunpack.c.l.b16 %v60
    %v144 = vunpack.c.h.b16 %v60
    %v145 = vunpack.c.l.b16 %v61
    %v146 = vunpack.c.h.b16 %v61
    %v147 = vunpack.c.l.b16 %v62
    %v148 = vunpack.c.h.b16 %v62
    %v149 = vunpack.c.l.b16 %v63
    %v150 = vunpack.c.h.b16 %v63
    %v151 = vunpack.c.l.b16 %v64
    %v152 = vunpack.c.h.b16 %v64
    %v153 = vunpack.c.l.b16 %v65
    %v154 = vunpack.c.h.b16 %v65
    %v155 = vunpack.c.l.b16 %v66
    %v156 = vunpack.c.h.b16 %v66
    %v157 = vunpack.c.l.b16 %v67
    %v158 = vunpack.c.h.b16 %v67
    %v159 = vunpack.c.l.b16 %v68
    %v160 = vunpack.c.h.b16 %v68
    %v161 = vunpack.c.l.b16 %v69
    %v162 = vunpack.c.h.b16 %v69
    %v163 = vunpack.c.l.b16 %v70
    %v164 = vunpack.c.h.b16 %v70
    %v165 = vunpack.c.l.b16 %v71
    %v166 = vunpack.c.h.b16 %v71
    %v167 = vunpack.c.l.b16 %v72
    %v168 = vunpack.c.h.b16 %v72
    %v169 = vunpack.c.l.b16 %v73
    %v170 = vunpack.c.h.b16 %v73
    %v171 = vunpack.c.l.b16 %v74
    %v172 = vunpack.c.h.b16 %v74
    %v173 = vunpack.c.l.b16 %v75
    %v174 = vunpack.c.h.b16 %v75
    %v175 = vunpack.c.l.b16 %v76
    %v176 = vunpack.c.h.b16 %v76
    %v177 = vunpack.c.l.b16 %v77
    %v178 = vunpack.c.h.b16 %v77
    %v179 = vunpack.c.l.b16 %v78
    %v180 = vunpack.c.h.b16 %v78
    %v181 = vunpack.c.l.b16 %v79
    %v182 = vunpack.c.h.b16 %v79
    %v183 = vunpack.c.l.b16 %v80
    %v184 = vunpack.c.h.b16 %v80
    %v185 = vunpack.c.l.b16 %v81
    %v186 = vunpack.c.h.b16 %v81
    %v187 = vunpack.c.l.b16 %v82
    %v188 = vunpack.c.h.b16 %v82
    %v189 = vpack.c.b16 %v127, %v125
    %v190 = vpack.c.b16 %v128, %v126
    %v191 = vpack.c.b16 %v131, %v129
    %v192 = vpack.c.b16 %v132, %v130
    %v193 = vpack.c.b16 %v135, %v133
    %v194 = vpack.c.b16 %v136, %v134
    %v195 = vpack.c.b16 %v139, %v137
    %v196 = vpack.c.b16 %v140, %v138
    %v197 = vpack.c.b16 %v143, %v141
    %v198 = vpack.c.b16 %v144, %v142
    %v199 = vpack.c.b16 %v147, %v145
    %v200 = vpack.c.b16 %v148, %v146
    %v201 = vpack.c.b16 %v151, %v149
    %v202 = vpack.c.b16 %v152, %v150
    %v203 = vpack.c.b16 %v155, %v153
    %v204 = vpack.c.b16 %v156, %v154
    %v205 = vpack.c.b16 %v159, %v157
    %v206 = vpack.c.b16 %v160, %v158
    %v207 = vpack.c.b16 %v163, %v161
    %v208 = vpack.c.b16 %v164, %v162
    %v209 = vpack.c.b16 %v167, %v165
    %v210 = vpack.c.b16 %v168, %v166
    %v211 = vpack.c.b16 %v171, %v169
    %v212 = vpack.c.b16 %v172, %v170
    %v213 = vpack.c.b16 %v175, %v173
    %v214 = vpack.c.b16 %v176, %v174
    %v215 = vpack.c.b16 %v179, %v177
    %v216 = vpack.c.b16 %v180, %v178
    %v217 = vpack.c.b16 %v183, %v181
    %v218 = vpack.c.b16 %v184, %v182
    %v219 = vpack.c.b16 %v187, %v185
    %v220 = vpack.c.b16 %v188, %v186
    %253 = vmatpush.bf16.msra.mxu0 %v203
    %254 = vmatpush.bf16.msra.mxu0 %v201
    %255 = vmatpush.bf16.msra.mxu0 %v199
    %256 = vmatpush.bf16.msra.mxu0 %v197
    %257 = vmatpush.bf16.msra.mxu0 %v195
    %258 = vmatpush.bf16.msra.mxu0 %v193
    %259 = vmatpush.bf16.msra.mxu0 %v191
    %260 = vmatpush.bf16.msra.mxu0 %v189
    %261 = vmatmul.bf16.gmra.mxu0 %v89
    %v262 = vpop.f32.mrf.mxu0
    %v263 = vadd.f32 0.0, %v262
    %v264 = vpop.f32.mrf.mxu0
    %v265 = vadd.f32 0.0, %v264
    %266 = vdwg.mxu0
    %267 = vmatpush.bf16.msra.mxu0 %v219
    %268 = vmatpush.bf16.msra.mxu0 %v217
    %269 = vmatpush.bf16.msra.mxu0 %v215
    %270 = vmatpush.bf16.msra.mxu0 %v213
    %271 = vmatpush.bf16.msra.mxu0 %v211
    %272 = vmatpush.bf16.msra.mxu0 %v209
    %273 = vmatpush.bf16.msra.mxu0 %v207
    %274 = vmatpush.bf16.msra.mxu0 %v205
    %275 = vmatmul.bf16.gmra.mxu0 %v90
    %v276 = vpop.f32.mrf.mxu0
    %v277 = vadd.f32 %v263, %v276
    %v278 = vpop.f32.mrf.mxu0
    %v279 = vadd.f32 %v265, %v278
    %280 = vdwg.mxu0
    %281 = vmatpush.bf16.msra.mxu0 %v204
    %282 = vmatpush.bf16.msra.mxu0 %v202
    %283 = vmatpush.bf16.msra.mxu0 %v200
    %284 = vmatpush.bf16.msra.mxu0 %v198
    %285 = vmatpush.bf16.msra.mxu0 %v196
    %286 = vmatpush.bf16.msra.mxu0 %v194
    %287 = vmatpush.bf16.msra.mxu0 %v192
    %288 = vmatpush.bf16.msra.mxu0 %v190
    %289 = vmatmul.bf16.gmra.mxu0 %v89
    %v290 = vpop.f32.mrf.mxu0
    %v291 = vadd.f32 0.0, %v290
    %v292 = vpop.f32.mrf.mxu0
    %v293 = vadd.f32 0.0, %v292
    %294 = vdwg.mxu0
    %295 = vmatpush.bf16.msra.mxu0 %v220
    %296 = vmatpush.bf16.msra.mxu0 %v218
    %297 = vmatpush.bf16.msra.mxu0 %v216
    %298 = vmatpush.bf16.msra.mxu0 %v214
    %299 = vmatpush.bf16.msra.mxu0 %v212
    %300 = vmatpush.bf16.msra.mxu0 %v210
    %301 = vmatpush.bf16.msra.mxu0 %v208
    %302 = vmatpush.bf16.msra.mxu0 %v206
    %303 = vmatmul.bf16.gmra.mxu0 %v90
    %v304 = vpop.f32.mrf.mxu0
    %v305 = vadd.f32 %v291, %v304
    %v306 = vpop.f32.mrf.mxu0
    %v307 = vadd.f32 %v293, %v306
    %308 = vdwg.mxu0
    %v309 = vmax.f32 %v277, 0.0
    %v310 = vmax.f32 %v305, 0.0
    %v311 = vmax.f32 %v279, 0.0
    %v312 = vmax.f32 %v307, 0.0
    %v313 = vpack.c.bf16 %v311, %v309
    %v314 = vpack.c.bf16 %v312, %v310
    %v315 = vld [vmem:[#allocation4] sm:$0xf]
    %v316 = vld [vmem:[#allocation4 + $0x4] sm:$0xf]
    %v317 = vld [vmem:[#allocation4 + $0x8] sm:$0xf]
    %v318 = vld [vmem:[#allocation4 + $0xc] sm:$0xf]
    %v319 = vld [vmem:[#allocation4 + $0x10] sm:$0xf]
    %v320 = vld [vmem:[#allocation4 + $0x14] sm:$0xf]
    %v321 = vld [vmem:[#allocation4 + $0x18] sm:$0xf]
    %v322 = vld [vmem:[#allocation4 + $0x1c] sm:$0xf]
    %v323 = vld [vmem:[#allocation4 + $0x20] sm:$0xf]
    %v324 = vld [vmem:[#allocation4 + $0x24] sm:$0xf]
    %v325 = vld [vmem:[#allocation4 + $0x28] sm:$0xf]
    %v326 = vld [vmem:[#allocation4 + $0x2c] sm:$0xf]
    %v327 = vld [vmem:[#allocation4 + $0x30] sm:$0xf]
    %v328 = vld [vmem:[#allocation4 + $0x34] sm:$0xf]
    %v329 = vld [vmem:[#allocation4 + $0x38] sm:$0xf]
    %v330 = vld [vmem:[#allocation4 + $0x3c] sm:$0xf]
    %v331 = vld [vmem:[#allocation4 + $0x40] sm:$0xf]
    %v332 = vld [vmem:[#allocation4 + $0x44] sm:$0xf]
    %v333 = vld [vmem:[#allocation4 + $0x48] sm:$0xf]
    %v334 = vld [vmem:[#allocation4 + $0x4c] sm:$0xf]
    %v335 = vld [vmem:[#allocation4 + $0x50] sm:$0xf]
    %v336 = vld [vmem:[#allocation4 + $0x54] sm:$0xf]
    %v337 = vld [vmem:[#allocation4 + $0x58] sm:$0xf]
    %v338 = vld [vmem:[#allocation4 + $0x5c] sm:$0xf]
    %v339 = vld [vmem:[#allocation4 + $0x60] sm:$0xf]
    %v340 = vld [vmem:[#allocation4 + $0x64] sm:$0xf]
    %v341 = vld [vmem:[#allocation4 + $0x68] sm:$0xf]
    %v342 = vld [vmem:[#allocation4 + $0x6c] sm:$0xf]
    %v343 = vld [vmem:[#allocation4 + $0x70] sm:$0xf]
    %v344 = vld [vmem:[#allocation4 + $0x74] sm:$0xf]
    %v345 = vld [vmem:[#allocation4 + $0x78] sm:$0xf]
    %v346 = vld [vmem:[#allocation4 + $0x7c] sm:$0xf]
    %v347 = vld [vmem:[%s3] sm:$0x1]
    %v349 = vperm.slane %v347, 0
    %v383 = vunpack.c.l.b16 %v315
    %v384 = vunpack.c.l.b16 %v316
    %v385 = vunpack.c.l.b16 %v317
    %v386 = vunpack.c.l.b16 %v318
    %v387 = vunpack.c.l.b16 %v319
    %v388 = vunpack.c.l.b16 %v320
    %v389 = vunpack.c.l.b16 %v321
    %v390 = vunpack.c.l.b16 %v322
    %v391 = vunpack.c.l.b16 %v323
    %v392 = vunpack.c.l.b16 %v324
    %v393 = vunpack.c.l.b16 %v325
    %v394 = vunpack.c.l.b16 %v326
    %v395 = vunpack.c.l.b16 %v327
    %v396 = vunpack.c.l.b16 %v328
    %v397 = vunpack.c.l.b16 %v329
    %v398 = vunpack.c.l.b16 %v330
    %v399 = vunpack.c.l.b16 %v331
    %v400 = vunpack.c.l.b16 %v332
    %v401 = vunpack.c.l.b16 %v333
    %v402 = vunpack.c.l.b16 %v334
    %v403 = vunpack.c.l.b16 %v335
    %v404 = vunpack.c.l.b16 %v336
    %v405 = vunpack.c.l.b16 %v337
    %v406 = vunpack.c.l.b16 %v338
    %v407 = vunpack.c.l.b16 %v339
    %v408 = vunpack.c.l.b16 %v340
    %v409 = vunpack.c.l.b16 %v341
    %v410 = vunpack.c.l.b16 %v342
    %v411 = vunpack.c.l.b16 %v343
    %v412 = vunpack.c.l.b16 %v344
    %v413 = vunpack.c.l.b16 %v345
    %v414 = vunpack.c.l.b16 %v346
    %v415 = vpack.c.b16 %v384, %v383
    %v416 = vpack.c.b16 %v386, %v385
    %v417 = vpack.c.b16 %v388, %v387
    %v418 = vpack.c.b16 %v390, %v389
    %v419 = vpack.c.b16 %v392, %v391
    %v420 = vpack.c.b16 %v394, %v393
    %v421 = vpack.c.b16 %v396, %v395
    %v422 = vpack.c.b16 %v398, %v397
    %v423 = vpack.c.b16 %v400, %v399
    %v424 = vpack.c.b16 %v402, %v401
    %v425 = vpack.c.b16 %v404, %v403
    %v426 = vpack.c.b16 %v406, %v405
    %v427 = vpack.c.b16 %v408, %v407
    %v428 = vpack.c.b16 %v410, %v409
    %v429 = vpack.c.b16 %v412, %v411
    %v430 = vpack.c.b16 %v414, %v413
    %447 = vmatpush.bf16.msra.mxu0 %v422
    %448 = vmatpush.bf16.msra.mxu0 %v421
    %449 = vmatpush.bf16.msra.mxu0 %v420
    %450 = vmatpush.bf16.msra.mxu0 %v419
    %451 = vmatpush.bf16.msra.mxu0 %v418
    %452 = vmatpush.bf16.msra.mxu0 %v417
    %453 = vmatpush.bf16.msra.mxu0 %v416
    %454 = vmatpush.bf16.msra.mxu0 %v415
    %455 = vmatmul.bf16.gmra.mxu0 %v313
    %v456 = vpop.f32.mrf.mxu0
    %v457 = vadd.f32 %v349, %v456
    %v458 = vpop.f32.mrf.mxu0
    %v459 = vadd.f32 %v349, %v458
    %460 = vdwg.mxu0
    %461 = vmatpush.bf16.msra.mxu0 %v430
    %462 = vmatpush.bf16.msra.mxu0 %v429
    %463 = vmatpush.bf16.msra.mxu0 %v428
    %464 = vmatpush.bf16.msra.mxu0 %v427
    %465 = vmatpush.bf16.msra.mxu0 %v426
    %466 = vmatpush.bf16.msra.mxu0 %v425
    %467 = vmatpush.bf16.msra.mxu0 %v424
    %468 = vmatpush.bf16.msra.mxu0 %v423
    %469 = vmatmul.bf16.gmra.mxu0 %v314
    %v470 = vpop.f32.mrf.mxu0
    %v471 = vadd.f32 %v457, %v470
    %v472 = vpop.f32.mrf.mxu0
    %v473 = vadd.f32 %v459, %v472
    %474 = vdwg.mxu0
    %475 = vst [vmem:[%s4] sm:$0xff] %v471
    %476 = vst [vmem:[%s4 + $0x8] sm:$0xff] %v473
    // Predicated region
    $region26: #{two_layer_net.1} parent=1 // pred_check
      _
    $region27: #{two_layer_net.1} parent=1 // pred_check_branch
      %478 = sbr.rel (0) target = $region29
    $region28: #{two_layer_net.1} parent=1 // pred_region
      _
    $region29: #{two_layer_net.1} parent=1 // pred_fallthru
      _
    // Predicated region
    $region30: #{two_layer_net.1} parent=1 // pred_check
      _
    $region31: #{two_layer_net.1} parent=1 // pred_check_branch
      %480 = sbr.rel (0) target = $region33
    $region32: #{two_layer_net.1} parent=1 // pred_region
      _
    $region33: #{two_layer_net.1} parent=1 // pred_fallthru
      _
    %481 = vsyncpa [#allocation3], 1
    %482 = vsyncpa [#allocation5], 1

</llo_original>
